<compile_context>
chip_gen: v5e
topology: v5e:2x2
jax: 0.10.0
libtpu: 0.0.40
codegen_flags: <defaults>
</compile_context>

<pallas_src>
import functools

import jax
import jax.numpy as jnp
from jax.experimental import pallas as pl
from jax.experimental.pallas import tpu as pltpu


# ----------------------------- kernel ---------------------------------------


def _fused_decoder_kernel(x_ref, ln_a_ref, ln_b_ref, w_ref, wb_ref,
                          fn_a_ref, fn_b_ref, o_ref, *, eps, hidden, n_layers):
    """All N stand-in layers + final LayerNorm on one row tile."""
    inv_hm1 = 1.0 / (hidden - 1)
    x = x_ref[...].astype(jnp.float32)                       # (TM, H) residual stream

    for l in range(n_layers):                                # static unroll: constant slices
        # ---- LayerNorm over hidden (torch std: unbiased, /(H-1)) ----
        mean = jnp.mean(x, axis=-1, keepdims=True)           # (TM, 1)
        diff = x - mean
        var = jnp.sum(diff * diff, axis=-1, keepdims=True) * inv_hm1
        inv = pl.reciprocal(jnp.sqrt(var) + eps, approx=True)  # EUP slot
        normed = ln_a_ref[l].astype(jnp.float32) * (diff * inv) \
            + ln_b_ref[l].astype(jnp.float32)                 # (TM, H)
        # ---- sublayer Linear(H, H): bf16 operands on the MXU, f32 accumulate ----
        sub = jnp.dot(normed.astype(jnp.bfloat16), w_ref[l],
                      preferred_element_type=jnp.float32)
        # ---- residual add (carried in f32) ----
        x = x + sub + wb_ref[l].astype(jnp.float32)

    # ---- Decoder-owned final LayerNorm (exact reciprocal: free, mem-bound) ----
    mean = jnp.mean(x, axis=-1, keepdims=True)
    diff = x - mean
    var = jnp.sum(diff * diff, axis=-1, keepdims=True) * inv_hm1
    inv = 1.0 / (jnp.sqrt(var) + eps)
    out = fn_a_ref[...].astype(jnp.float32) * (diff * inv) + fn_b_ref[...].astype(jnp.float32)
    o_ref[...] = out.astype(o_ref.dtype)


# ----------------------------- sizing helpers --------------------------------


def _round_up(n, m):
    return ((n + m - 1) // m) * m


def _vmem_capacity_bytes():
    try:
        return int(pltpu.get_tpu_info().vmem_capacity_bytes)
    except Exception:
        return 64 << 20        # v7x-safe fallback


def _resident_bytes(n_layers, H):
    # stacked bf16 weights + per-layer LN gain/bias + linear bias (f32) + final norm params
    return n_layers * H * H * 2 + 3 * n_layers * H * 4 + 2 * H * 4


def _pick_tm(R, H, io_itemsize, resident_eff, block_rows):
    """Largest row tile that fits VMEM, >= 2 grid steps when R allows it."""
    sub_mult = max(8, (8 * 4) // io_itemsize)        # 8 rows (f32) / 16 rows (bf16) sublane packing
    usable = int(0.75 * _vmem_capacity_bytes())
    # per-row cost: double-buffered in + out tiles + ~8 live f32 (1,H) temporaries
    per_row = 2 * (2 * H * io_itemsize) + 8 * H * 4
    fit_rows = max((usable - resident_eff) // per_row, sub_mult)
    tm = min(block_rows, fit_rows, max(-(-R // 2), 1))   # cap: >= 2 steps for the 2 v7x TCs
    tm = max(_round_up(tm, sub_mult), sub_mult)
    return tm


def _vmem_limit_bytes(tm, H, io_itemsize, resident_eff):
    est = resident_eff + 2 * (2 * tm * H * io_itemsize) + 8 * tm * H * 4 + (64 << 10)
    cap = int(0.9 * _vmem_capacity_bytes())
    return int(min(max(int(1.5 * est), 16 << 20), cap))


def _resident_spec(block_shape, single_buffer):
    """Constant-index (VMEM-resident) input; single-buffered when it is big."""
    ndim = len(block_shape)
    index_map = lambda i, _n=ndim: (0,) * _n
    if single_buffer:
        try:
            return pl.BlockSpec(block_shape, index_map, pipeline_mode=pl.Buffered(1))
        except Exception:
            pass   # older pallas without pipeline_mode: fall back to default buffering
    return pl.BlockSpec(block_shape, index_map)


# ----------------------------- wrapper ---------------------------------------


def decoder_forward(x, memory, src_mask, tgt_mask, layer_params, norm_a, norm_b,
                    *, eps=1e-6, block_rows=512):
    """Decoder.forward: N stand-in layers then the final LayerNorm, one pallas_call."""
    del memory, src_mask, tgt_mask  # TODO(synk): consumed only by the real DecoderLayer internals.
    B, S, H = x.shape
    assert H % 128 == 0, "hidden dim must be a multiple of 128 (lane-dense tiles)"
    n_layers = len(layer_params)
    assert n_layers >= 1

    # ---- stack per-layer params once (resident in VMEM for the whole kernel) ----
    ln_a = jnp.stack([p[0] for p in layer_params]).reshape(n_layers, 1, H).astype(jnp.float32)
    ln_b = jnp.stack([p[1] for p in layer_params]).reshape(n_layers, 1, H).astype(jnp.float32)
    w = jnp.stack([p[2] for p in layer_params]).astype(jnp.bfloat16)          # (N, H, H)
    wb = jnp.stack([p[3] for p in layer_params]).reshape(n_layers, 1, H).astype(jnp.float32)
    fa = norm_a.reshape(1, H).astype(jnp.float32)
    fb = norm_b.reshape(1, H).astype(jnp.float32)

    io_itemsize = jnp.dtype(x.dtype).itemsize
    resident = _resident_bytes(n_layers, H)
    single_buffer = resident > (4 << 20)              # only worth it for big weights (v7x)
    resident_eff = resident * (1 if single_buffer else 2)

    R = B * S
    tm = _pick_tm(R, H, io_itemsize, resident_eff, block_rows)
    Rp = _round_up(R, tm)

    # ---- flatten + pad ONCE (not per layer) ----
    x2 = x.reshape(R, H)
    if Rp != R:
        x2 = jnp.pad(x2, ((0, Rp - R), (0, 0)))

    kernel = functools.partial(_fused_decoder_kernel, eps=eps, hidden=H,
                               n_layers=n_layers)
    out = pl.pallas_call(
        kernel,
        out_shape=jax.ShapeDtypeStruct((Rp, H), x.dtype),
        grid_spec=pl.GridSpec(
            grid=(Rp // tm,),
            in_specs=[
                pl.BlockSpec((tm, H), lambda i: (i, 0)),            # x: streamed row tiles
                _resident_spec((n_layers, 1, H), single_buffer),    # per-layer LN gain
                _resident_spec((n_layers, 1, H), single_buffer),    # per-layer LN bias
                _resident_spec((n_layers, H, H), single_buffer),    # stacked weights (bf16)
                _resident_spec((n_layers, 1, H), single_buffer),    # per-layer Linear bias
                _resident_spec((1, H), single_buffer),              # final LN gain
                _resident_spec((1, H), single_buffer),              # final LN bias
            ],
            out_specs=pl.BlockSpec((tm, H), lambda i: (i, 0)),
        ),
        compiler_params=pltpu.CompilerParams(
            dimension_semantics=("parallel",),
            vmem_limit_bytes=_vmem_limit_bytes(tm, H, io_itemsize, resident_eff),
        ),
    )(x2, ln_a, ln_b, w, wb, fa, fb)

    # ---- unpad ONCE ----
    if Rp != R:
        out = out[:R]
    return out.reshape(B, S, H)


# ----------------------------- reference -------------------------------------


def _layernorm_ref(x, a, b, eps):
    mean = jnp.mean(x, axis=-1, keepdims=True)
    diff = x - mean
    var = jnp.sum(diff * diff, axis=-1, keepdims=True) / (x.shape[-1] - 1)
    std = jnp.sqrt(var)
    return a * diff / (std + eps) + b


def _decoder_ref(x, layer_params, norm_a, norm_b, eps=1e-6):
    x = x.astype(jnp.float32)
    for (a, b, w, wb) in layer_params:
        x = x + _layernorm_ref(x, a, b, eps) @ w + wb
    return _layernorm_ref(x, norm_a, norm_b, eps)


# ----------------------------- demo / test -----------------------------------


if __name__ == "__main__":
    B, S, H, N = 2, 8, 128, 2           # H multiple of 128 -> lane-dense tiles
    key = jax.random.PRNGKey(0)
    kx, km, *lkeys = jax.random.split(key, 2 + 2 * N)

    x = jax.random.normal(kx, (B, S, H), dtype=jnp.float32)
    memory = jax.random.normal(km, (B, S, H), dtype=jnp.float32)   # unused by stand-in
    src_mask = jnp.ones((B, 1, S), dtype=jnp.float32)
    tgt_mask = jnp.ones((B, S, S), dtype=jnp.float32)

    layer_params = []
    for l in range(N):
        kw, kb = lkeys[2 * l], lkeys[2 * l + 1]
        a_ln = jnp.ones((H,), jnp.float32)      # LayerNorm init: ones
        b_ln = jnp.zeros((H,), jnp.float32)     # LayerNorm init: zeros
        w = jax.random.normal(kw, (H, H), jnp.float32) * 0.05
        wb = jax.random.normal(kb, (H,), jnp.float32) * 0.02
        layer_params.append((a_ln, b_ln, w, wb))

    norm_a = jnp.ones((H,), jnp.float32)
    norm_b = jnp.zeros((H,), jnp.float32)

    # R = 16 rows -> the >=2-grid-step cap picks tm=8, exercising the tiled path.
    out = decoder_forward(x, memory, src_mask, tgt_mask, layer_params,
                          norm_a, norm_b)
    out = jax.block_until_ready(out)

    ref = _decoder_ref(x, layer_params, norm_a, norm_b, eps=1e-6)
    assert out.shape == (B, S, H)
    # Tolerance covers bf16 MXU operands + per-layer approx reciprocal
    # (f32 accumulate throughout; final norm uses the exact reciprocal).
    assert jnp.allclose(out, ref, atol=5e-2, rtol=5e-2), float(jnp.max(jnp.abs(out - ref)))
    print("KERNEL_OK")
</pallas_src>

<mosaic_0001>
module attributes {stable_mosaic.version = 11 : i64} {
  func.func @_fused_decoder_kernel(%arg0: i32, %arg1: memref<8x128xf32, #tpu.memory_space<vmem>>, %arg2: memref<2x1x128xf32, #tpu.memory_space<vmem>>, %arg3: memref<2x1x128xf32, #tpu.memory_space<vmem>>, %arg4: memref<2x128x128xbf16, #tpu.memory_space<vmem>>, %arg5: memref<2x1x128xf32, #tpu.memory_space<vmem>>, %arg6: memref<1x128xf32, #tpu.memory_space<vmem>>, %arg7: memref<1x128xf32, #tpu.memory_space<vmem>>, %arg8: memref<8x128xf32, #tpu.memory_space<vmem>>) attributes {dimension_semantics = [#tpu.dimension_semantics<parallel>], iteration_bounds = array<i64: 2>, scalar_prefetch = 0 : i64, scratch_operands = 0 : i64, tpu.core_type = #tpu.core_type<tc>, window_params = [{transform_indices = @transform_0, window_bounds = array<i64: 8, 128>}, {pipeline_mode = #tpu.pipeline_mode<synchronous>, transform_indices = @transform_1, window_bounds = array<i64: 2, 1, 128>}, {pipeline_mode = #tpu.pipeline_mode<synchronous>, transform_indices = @transform_2, window_bounds = array<i64: 2, 1, 128>}, {pipeline_mode = #tpu.pipeline_mode<synchronous>, transform_indices = @transform_3, window_bounds = array<i64: 2, 128, 128>}, {pipeline_mode = #tpu.pipeline_mode<synchronous>, transform_indices = @transform_4, window_bounds = array<i64: 2, 1, 128>}, {pipeline_mode = #tpu.pipeline_mode<synchronous>, transform_indices = @transform_5, window_bounds = array<i64: 1, 128>}, {pipeline_mode = #tpu.pipeline_mode<synchronous>, transform_indices = @transform_6, window_bounds = array<i64: 1, 128>}, {transform_indices = @transform_7, window_bounds = array<i64: 8, 128>}]} {
    %c0 = arith.constant 0 : index
    %c0_0 = arith.constant 0 : index
    %0 = vector.load %arg1[%c0, %c0_0] : memref<8x128xf32, #tpu.memory_space<vmem>>, vector<8x128xf32>
    %cst = arith.constant dense<0.000000e+00> : vector<8xf32>
    %1 = vector.multi_reduction <add>, %0, %cst [1] : vector<8x128xf32> to vector<8xf32>
    %2 = vector.shape_cast %1 : vector<8xf32> to vector<8x1xf32>
    %cst_1 = arith.constant 1.280000e+02 : f32
    %3 = vector.broadcast %cst_1 : f32 to vector<8x1xf32>
    %4 = arith.divf %2, %3 : vector<8x1xf32>
    %5 = vector.broadcast %4 : vector<8x1xf32> to vector<8x128xf32>
    %6 = arith.subf %0, %5 : vector<8x128xf32>
    %7 = arith.mulf %6, %6 : vector<8x128xf32>
    %cst_2 = arith.constant dense<0.000000e+00> : vector<8xf32>
    %8 = vector.multi_reduction <add>, %7, %cst_2 [1] : vector<8x128xf32> to vector<8xf32>
    %9 = vector.shape_cast %8 : vector<8xf32> to vector<8x1xf32>
    %cst_3 = arith.constant 0.00787401571 : f32
    %10 = vector.broadcast %cst_3 : f32 to vector<8x1xf32>
    %11 = arith.mulf %9, %10 : vector<8x1xf32>
    %12 = math.sqrt %11 : vector<8x1xf32>
    %cst_4 = arith.constant 9.99999997E-7 : f32
    %13 = vector.broadcast %cst_4 : f32 to vector<8x1xf32>
    %14 = arith.addf %12, %13 : vector<8x1xf32>
    %15 = tpu.reciprocal %14 {approx = true} : vector<8x1xf32> -> vector<8x1xf32>
    %c0_5 = arith.constant 0 : index
    %c0_6 = arith.constant 0 : index
    %c0_7 = arith.constant 0 : index
    %16 = vector.load %arg2[%c0_5, %c0_6, %c0_7] : memref<2x1x128xf32, #tpu.memory_space<vmem>>, vector<1x1x128xf32>
    %17 = vector.shape_cast %16 : vector<1x1x128xf32> to vector<1x128xf32>
    %18 = vector.broadcast %15 : vector<8x1xf32> to vector<8x128xf32>
    %19 = arith.mulf %6, %18 : vector<8x128xf32>
    %20 = vector.broadcast %17 : vector<1x128xf32> to vector<8x128xf32>
    %21 = arith.mulf %20, %19 : vector<8x128xf32>
    %c0_8 = arith.constant 0 : index
    %c0_9 = arith.constant 0 : index
    %c0_10 = arith.constant 0 : index
    %22 = vector.load %arg3[%c0_8, %c0_9, %c0_10] : memref<2x1x128xf32, #tpu.memory_space<vmem>>, vector<1x1x128xf32>
    %23 = vector.shape_cast %22 : vector<1x1x128xf32> to vector<1x128xf32>
    %24 = vector.broadcast %23 : vector<1x128xf32> to vector<8x128xf32>
    %25 = arith.addf %21, %24 : vector<8x128xf32>
    %26 = arith.truncf %25 : vector<8x128xf32> to vector<8x128xbf16>
    %c0_11 = arith.constant 0 : index
    %c0_12 = arith.constant 0 : index
    %c0_13 = arith.constant 0 : index
    %27 = vector.load %arg4[%c0_11, %c0_12, %c0_13] : memref<2x128x128xbf16, #tpu.memory_space<vmem>>, vector<1x128x128xbf16>
    %28 = vector.shape_cast %27 : vector<1x128x128xbf16> to vector<128x128xbf16>
    %cst_14 = arith.constant dense<0.000000e+00> : vector<8x128xf32>
    %29 = tpu.matmul %26, %28, %cst_14 {dimension_numbers = #tpu.dot_dimension_numbers<[1], [0], [0], [1], [0, 0, 1, 1], [], []>} : vector<8x128xbf16>, vector<128x128xbf16>, vector<8x128xf32> -> vector<8x128xf32>
    %30 = arith.addf %0, %29 : vector<8x128xf32>
    %c0_15 = arith.constant 0 : index
    %c0_16 = arith.constant 0 : index
    %c0_17 = arith.constant 0 : index
    %31 = vector.load %arg5[%c0_15, %c0_16, %c0_17] : memref<2x1x128xf32, #tpu.memory_space<vmem>>, vector<1x1x128xf32>
    %32 = vector.shape_cast %31 : vector<1x1x128xf32> to vector<1x128xf32>
    %33 = vector.broadcast %32 : vector<1x128xf32> to vector<8x128xf32>
    %34 = arith.addf %30, %33 : vector<8x128xf32>
    %cst_18 = arith.constant dense<0.000000e+00> : vector<8xf32>
    %35 = vector.multi_reduction <add>, %34, %cst_18 [1] : vector<8x128xf32> to vector<8xf32>
    %36 = vector.shape_cast %35 : vector<8xf32> to vector<8x1xf32>
    %cst_19 = arith.constant 1.280000e+02 : f32
    %37 = vector.broadcast %cst_19 : f32 to vector<8x1xf32>
    %38 = arith.divf %36, %37 : vector<8x1xf32>
    %39 = vector.broadcast %38 : vector<8x1xf32> to vector<8x128xf32>
    %40 = arith.subf %34, %39 : vector<8x128xf32>
    %41 = arith.mulf %40, %40 : vector<8x128xf32>
    %cst_20 = arith.constant dense<0.000000e+00> : vector<8xf32>
    %42 = vector.multi_reduction <add>, %41, %cst_20 [1] : vector<8x128xf32> to vector<8xf32>
    %43 = vector.shape_cast %42 : vector<8xf32> to vector<8x1xf32>
    %cst_21 = arith.constant 0.00787401571 : f32
    %44 = vector.broadcast %cst_21 : f32 to vector<8x1xf32>
    %45 = arith.mulf %43, %44 : vector<8x1xf32>
    %46 = math.sqrt %45 : vector<8x1xf32>
    %cst_22 = arith.constant 9.99999997E-7 : f32
    %47 = vector.broadcast %cst_22 : f32 to vector<8x1xf32>
    %48 = arith.addf %46, %47 : vector<8x1xf32>
    %49 = tpu.reciprocal %48 {approx = true} : vector<8x1xf32> -> vector<8x1xf32>
    %c1 = arith.constant 1 : index
    %c0_23 = arith.constant 0 : index
    %c0_24 = arith.constant 0 : index
    %50 = vector.load %arg2[%c1, %c0_23, %c0_24] : memref<2x1x128xf32, #tpu.memory_space<vmem>>, vector<1x1x128xf32>
    %51 = vector.shape_cast %50 : vector<1x1x128xf32> to vector<1x128xf32>
    %52 = vector.broadcast %49 : vector<8x1xf32> to vector<8x128xf32>
    %53 = arith.mulf %40, %52 : vector<8x128xf32>
    %54 = vector.broadcast %51 : vector<1x128xf32> to vector<8x128xf32>
    %55 = arith.mulf %54, %53 : vector<8x128xf32>
    %c1_25 = arith.constant 1 : index
    %c0_26 = arith.constant 0 : index
    %c0_27 = arith.constant 0 : index
    %56 = vector.load %arg3[%c1_25, %c0_26, %c0_27] : memref<2x1x128xf32, #tpu.memory_space<vmem>>, vector<1x1x128xf32>
    %57 = vector.shape_cast %56 : vector<1x1x128xf32> to vector<1x128xf32>
    %58 = vector.broadcast %57 : vector<1x128xf32> to vector<8x128xf32>
    %59 = arith.addf %55, %58 : vector<8x128xf32>
    %60 = arith.truncf %59 : vector<8x128xf32> to vector<8x128xbf16>
    %c1_28 = arith.constant 1 : index
    %c0_29 = arith.constant 0 : index
    %c0_30 = arith.constant 0 : index
    %61 = vector.load %arg4[%c1_28, %c0_29, %c0_30] : memref<2x128x128xbf16, #tpu.memory_space<vmem>>, vector<1x128x128xbf16>
    %62 = vector.shape_cast %61 : vector<1x128x128xbf16> to vector<128x128xbf16>
    %cst_31 = arith.constant dense<0.000000e+00> : vector<8x128xf32>
    %63 = tpu.matmul %60, %62, %cst_31 {dimension_numbers = #tpu.dot_dimension_numbers<[1], [0], [0], [1], [0, 0, 1, 1], [], []>} : vector<8x128xbf16>, vector<128x128xbf16>, vector<8x128xf32> -> vector<8x128xf32>
    %64 = arith.addf %34, %63 : vector<8x128xf32>
    %c1_32 = arith.constant 1 : index
    %c0_33 = arith.constant 0 : index
    %c0_34 = arith.constant 0 : index
    %65 = vector.load %arg5[%c1_32, %c0_33, %c0_34] : memref<2x1x128xf32, #tpu.memory_space<vmem>>, vector<1x1x128xf32>
    %66 = vector.shape_cast %65 : vector<1x1x128xf32> to vector<1x128xf32>
    %67 = vector.broadcast %66 : vector<1x128xf32> to vector<8x128xf32>
    %68 = arith.addf %64, %67 : vector<8x128xf32>
    %cst_35 = arith.constant dense<0.000000e+00> : vector<8xf32>
    %69 = vector.multi_reduction <add>, %68, %cst_35 [1] : vector<8x128xf32> to vector<8xf32>
    %70 = vector.shape_cast %69 : vector<8xf32> to vector<8x1xf32>
    %cst_36 = arith.constant 1.280000e+02 : f32
    %71 = vector.broadcast %cst_36 : f32 to vector<8x1xf32>
    %72 = arith.divf %70, %71 : vector<8x1xf32>
    %73 = vector.broadcast %72 : vector<8x1xf32> to vector<8x128xf32>
    %74 = arith.subf %68, %73 : vector<8x128xf32>
    %75 = arith.mulf %74, %74 : vector<8x128xf32>
    %cst_37 = arith.constant dense<0.000000e+00> : vector<8xf32>
    %76 = vector.multi_reduction <add>, %75, %cst_37 [1] : vector<8x128xf32> to vector<8xf32>
    %77 = vector.shape_cast %76 : vector<8xf32> to vector<8x1xf32>
    %cst_38 = arith.constant 0.00787401571 : f32
    %78 = vector.broadcast %cst_38 : f32 to vector<8x1xf32>
    %79 = arith.mulf %77, %78 : vector<8x1xf32>
    %80 = math.sqrt %79 : vector<8x1xf32>
    %cst_39 = arith.constant 9.99999997E-7 : f32
    %81 = vector.broadcast %cst_39 : f32 to vector<8x1xf32>
    %82 = arith.addf %80, %81 : vector<8x1xf32>
    %cst_40 = arith.constant 1.000000e+00 : f32
    %83 = vector.broadcast %cst_40 : f32 to vector<8x1xf32>
    %84 = arith.divf %83, %82 : vector<8x1xf32>
    %c0_41 = arith.constant 0 : index
    %c0_42 = arith.constant 0 : index
    %85 = vector.load %arg6[%c0_41, %c0_42] : memref<1x128xf32, #tpu.memory_space<vmem>>, vector<1x128xf32>
    %86 = vector.broadcast %84 : vector<8x1xf32> to vector<8x128xf32>
    %87 = arith.mulf %74, %86 : vector<8x128xf32>
    %88 = vector.broadcast %85 : vector<1x128xf32> to vector<8x128xf32>
    %89 = arith.mulf %88, %87 : vector<8x128xf32>
    %c0_43 = arith.constant 0 : index
    %c0_44 = arith.constant 0 : index
    %90 = vector.load %arg7[%c0_43, %c0_44] : memref<1x128xf32, #tpu.memory_space<vmem>>, vector<1x128xf32>
    %91 = vector.broadcast %90 : vector<1x128xf32> to vector<8x128xf32>
    %92 = arith.addf %89, %91 : vector<8x128xf32>
    %c0_45 = arith.constant 0 : index
    %c0_46 = arith.constant 0 : index
    %93 = vector.load %arg8[%c0_45, %c0_46] : memref<8x128xf32, #tpu.memory_space<vmem>>, vector<8x128xf32>
    tpu.vector_store %arg8[%c0_45, %c0_46], %92 {strides = array<i32>} : memref<8x128xf32, #tpu.memory_space<vmem>>, vector<8x128xf32>,
    return
  }
  func.func @transform_0(%arg0: i32) -> (i32, i32) {
    %c0_i32 = arith.constant 0 : i32
    %c0_i32_0 = arith.constant 0 : i32
    return %arg0, %c0_i32 : i32, i32
  }
  func.func @transform_1(%arg0: i32) -> (i32, i32, i32) {
    %c0_i32 = arith.constant 0 : i32
    %c0_i32_0 = arith.constant 0 : i32
    %c0_i32_1 = arith.constant 0 : i32
    %c0_i32_2 = arith.constant 0 : i32
    return %c0_i32, %c0_i32_0, %c0_i32_1 : i32, i32, i32
  }
  func.func @transform_2(%arg0: i32) -> (i32, i32, i32) {
    %c0_i32 = arith.constant 0 : i32
    %c0_i32_0 = arith.constant 0 : i32
    %c0_i32_1 = arith.constant 0 : i32
    %c0_i32_2 = arith.constant 0 : i32
    return %c0_i32, %c0_i32_0, %c0_i32_1 : i32, i32, i32
  }
  func.func @transform_3(%arg0: i32) -> (i32, i32, i32) {
    %c0_i32 = arith.constant 0 : i32
    %c0_i32_0 = arith.constant 0 : i32
    %c0_i32_1 = arith.constant 0 : i32
    %c0_i32_2 = arith.constant 0 : i32
    return %c0_i32, %c0_i32_0, %c0_i32_1 : i32, i32, i32
  }
  func.func @transform_4(%arg0: i32) -> (i32, i32, i32) {
    %c0_i32 = arith.constant 0 : i32
    %c0_i32_0 = arith.constant 0 : i32
    %c0_i32_1 = arith.constant 0 : i32
    %c0_i32_2 = arith.constant 0 : i32
    return %c0_i32, %c0_i32_0, %c0_i32_1 : i32, i32, i32
  }
  func.func @transform_5(%arg0: i32) -> (i32, i32) {
    %c0_i32 = arith.constant 0 : i32
    %c0_i32_0 = arith.constant 0 : i32
    %c0_i32_1 = arith.constant 0 : i32
    return %c0_i32, %c0_i32_0 : i32, i32
  }
  func.func @transform_6(%arg0: i32) -> (i32, i32) {
    %c0_i32 = arith.constant 0 : i32
    %c0_i32_0 = arith.constant 0 : i32
    %c0_i32_1 = arith.constant 0 : i32
    return %c0_i32, %c0_i32_0 : i32, i32
  }
  func.func @transform_7(%arg0: i32) -> (i32, i32) {
    %c0_i32 = arith.constant 0 : i32
    %c0_i32_0 = arith.constant 0 : i32
    return %arg0, %c0_i32 : i32, i32
  }
}

</mosaic_0001>

<llo_original>
// kernel: tpu_custom_call.1
$region0: #{tpu_custom_call.1}
  #allocation0 [shape = 'u32[]', space=smem, size = 0x4, offset = 0x4, fixed_abs, tag = 'smem constant byte address 0x4 - core index']
  #allocation1 [shape = 'u32[72,128]{1,0:T(1,128)}', space=vmem, size = 0x9000, scoped, tag = 'internal scratch']
  %s0 = inlined_call_operand.hbm [shape: f32[16,128], index: 0, kind: input, shape index: {}]
  %s1 = inlined_call_operand.hbm [shape: f32[2,1,128], index: 1, kind: input, shape index: {}]
  %s2 = inlined_call_operand.hbm [shape: f32[2,1,128], index: 2, kind: input, shape index: {}]
  %s3 = inlined_call_operand.hbm [shape: bf16[2,128,128], index: 3, kind: input, shape index: {}]
  %s4 = inlined_call_operand.vmem [shape: f32[2,1,128], index: 4, kind: input, shape index: {}]
  %s5 = inlined_call_operand.vmem [shape: f32[1,128], index: 5, kind: input, shape index: {}]
  %s6 = inlined_call_operand.vmem [shape: f32[1,128], index: 6, kind: input, shape index: {}]
  %s7 = inlined_call_operand.hbm [shape: f32[16,128], index: 7, kind: output, shape index: {}]
  %s8 = sld [smem:[#allocation0]]
  $region77: #{tpu_custom_call.1} parent=0
    _
  %s10 = ssub.s32 1, %s8
  %s11 = scalar_select 0, %s10, %s8
  $region1: #{tpu_custom_call.1} parent=0
    #allocation2 [shape = 'u8[8192]{0}', space=vmem, size = 0x2000, scoped, tag = 'input window, operand 0']
    #allocation3 [shape = 's32[2]{0}', space=sflag, size = 0x8, scoped, tag = 'scoped memory for tpu_custom_call.1']
    #allocation4 [shape = 's32[2]{0}', space=sflag, size = 0x8, scoped, tag = 'scoped memory for tpu_custom_call.1']
    #allocation5 [shape = 'u8[1024]{0}', space=vmem, size = 0x400, scoped, tag = 'input window, operand 1, single buffered']
    #allocation6 [shape = 's32[1]{0}', space=sflag, size = 0x4, scoped, tag = 'scoped memory for tpu_custom_call.1']
    #allocation7 [shape = 'u8[1024]{0}', space=vmem, size = 0x400, scoped, tag = 'input window, operand 2, single buffered']
    #allocation8 [shape = 'u8[65536]{0}', space=vmem, size = 0x10000, scoped, tag = 'input window, operand 3, single buffered']
    #allocation9 [shape = 's32[1]{0}', space=sflag, size = 0x4, scoped, tag = 'scoped memory for tpu_custom_call.1']
    #allocation10 [shape = 'u8[8192]{0}', space=vmem, size = 0x2000, scoped, tag = 'output window, operand 0']
    %12 = vsyncpa [#allocation3], 0
    %s13 = scalar_lea.sflag [#allocation3], 1
    %14 = vsyncpa %s13, 0
    %15 = vsyncpa [#allocation6], 0
    %16 = vsyncpa [#allocation9], 0
    %17 = vsyncpa [#allocation4], 0
    %s18 = scalar_lea.sflag [#allocation4], 1
    %19 = vsyncpa %s18, 0
    loop: start=0, step=1, limit=4
    $region2: #{tpu_custom_call.1} parent=1 // loop_pre_header
      _
    $region3: #{tpu_custom_call.1} parent=1 // loop_header
      %s21 = sphi 0, %s25
      %p22 = scmp.ge.s32.totalorder %s21, 4
      %s31 = sphi 0, %s33
      %s34 = sphi 0, %s31
      %s35 = sphi 0, %s34
      %s51 = sphi 0, %s35
      %s55 = sphi 0, %s55
      %s57 = sphi 0, %s55
      %s58 = sphi 0, %s57
      %s72 = sphi 0, %s58
      %s76 = sphi 0, %s76
      %s78 = sphi 0, %s76
      %s79 = sphi 0, %s78
      %s93 = sphi 0, %s79
      %s97 = sphi 0, %s97
      %s99 = sphi 0, %s97
      %s100 = sphi 0, %s99
      %s114 = sphi 0, %s100
      %s118 = sphi 0, %s118
      %s120 = sphi 0, %s118
      %s121 = sphi 0, %s120
      %s135 = sphi 0, %s121
      %s139 = sphi 0, %s139
      %s141 = sphi 0, %s139
      %s142 = sphi 0, %s141
      %s156 = sphi 0, %s142
      %s160 = sphi 0, %s160
      %s162 = sphi 0, %s160
      %s163 = sphi 0, %s162
      %s177 = sphi 0, %s163
      %s183 = sphi 0, %s185
      %s186 = sphi 0, %s183
      %s187 = sphi 0, %s186
      %s203 = sphi 0, %s187
    $region4: #{tpu_custom_call.1} parent=1 // loop_header_branch
      %24 = sbr.rel (%p22) target = $region8
    $region5: #{tpu_custom_call.1} parent=1 // loop_body
      %s26 = ssub.s32 %s21, 1
      %s27 = ssub.s32 %s21, 2
      %s28 = sadd.s32 %s21, 1
      %s29 = ssub.s32 %s21, %s28
      %p30 = scmp.eq.s32.totalorder %s29, 0
      %s32 = sadd.s32 %s31, 1
      %s33 = scalar_select %p30, %s31, %s32
      %p36 = pneg %p30
      %p37 = scmp.eq.s32.totalorder %s21, 1
      %p38 = por %p36, %p37
      %p39 = scmp.ne.s32.totalorder %s31, %s34
      %p40 = scmp.eq.s32.totalorder %s21, 0
      %p41 = por %p39, %p40
      %p42 = scmp.ne.s32.totalorder %s31, %s34
      %p43 = scmp.eq.s32.totalorder %s26, 1
      %p44 = por %p42, %p43
      %p45 = scmp.ne.s32.totalorder %s34, %s35
      %p46 = scmp.eq.s32.totalorder %s26, 0
      %p47 = por %p45, %p46
      %p48 = scmp.ne.s32.totalorder %s34, %s35
      %p49 = scmp.eq.s32.totalorder %s27, 1
      %p50 = por %p48, %p49
      %p52 = scmp.ne.s32.totalorder %s35, %s51
      %p53 = scmp.eq.s32.totalorder %s27, 0
      %p54 = por %p52, %p53
      %s56 = sadd.s32 %s55, 1
      %p59 = scmp.eq.s32.totalorder %s21, 1
      %p60 = scmp.ne.s32.totalorder %s55, %s57
      %p61 = scmp.eq.s32.totalorder %s21, 0
      %p62 = por %p60, %p61
      %p63 = scmp.ne.s32.totalorder %s55, %s57
      %p64 = scmp.eq.s32.totalorder %s26, 1
      %p65 = por %p63, %p64
      %p66 = scmp.ne.s32.totalorder %s57, %s58
      %p67 = scmp.eq.s32.totalorder %s26, 0
      %p68 = por %p66, %p67
      %p69 = scmp.ne.s32.totalorder %s57, %s58
      %p70 = scmp.eq.s32.totalorder %s27, 1
      %p71 = por %p69, %p70
      %p73 = scmp.ne.s32.totalorder %s58, %s72
      %p74 = scmp.eq.s32.totalorder %s27, 0
      %p75 = por %p73, %p74
      %s77 = sadd.s32 %s76, 1
      %p80 = scmp.eq.s32.totalorder %s21, 1
      %p81 = scmp.ne.s32.totalorder %s76, %s78
      %p82 = scmp.eq.s32.totalorder %s21, 0
      %p83 = por %p81, %p82
      %p84 = scmp.ne.s32.totalorder %s76, %s78
      %p85 = scmp.eq.s32.totalorder %s26, 1
      %p86 = por %p84, %p85
      %p87 = scmp.ne.s32.totalorder %s78, %s79
      %p88 = scmp.eq.s32.totalorder %s26, 0
      %p89 = por %p87, %p88
      %p90 = scmp.ne.s32.totalorder %s78, %s79
      %p91 = scmp.eq.s32.totalorder %s27, 1
      %p92 = por %p90, %p91
      %p94 = scmp.ne.s32.totalorder %s79, %s93
      %p95 = scmp.eq.s32.totalorder %s27, 0
      %p96 = por %p94, %p95
      %s98 = sadd.s32 %s97, 1
      %p101 = scmp.eq.s32.totalorder %s21, 1
      %p102 = scmp.ne.s32.totalorder %s97, %s99
      %p103 = scmp.eq.s32.totalorder %s21, 0
      %p104 = por %p102, %p103
      %p105 = scmp.ne.s32.totalorder %s97, %s99
      %p106 = scmp.eq.s32.totalorder %s26, 1
      %p107 = por %p105, %p106
      %p108 = scmp.ne.s32.totalorder %s99, %s100
      %p109 = scmp.eq.s32.totalorder %s26, 0
      %p110 = por %p108, %p109
      %p111 = scmp.ne.s32.totalorder %s99, %s100
      %p112 = scmp.eq.s32.totalorder %s27, 1
      %p113 = por %p111, %p112
      %p115 = scmp.ne.s32.totalorder %s100, %s114
      %p116 = scmp.eq.s32.totalorder %s27, 0
      %p117 = por %p115, %p116
      %s119 = sadd.s32 %s118, 1
      %p122 = scmp.eq.s32.totalorder %s21, 1
      %p123 = scmp.ne.s32.totalorder %s118, %s120
      %p124 = scmp.eq.s32.totalorder %s21, 0
      %p125 = por %p123, %p124
      %p126 = scmp.ne.s32.totalorder %s118, %s120
      %p127 = scmp.eq.s32.totalorder %s26, 1
      %p128 = por %p126, %p127
      %p129 = scmp.ne.s32.totalorder %s120, %s121
      %p130 = scmp.eq.s32.totalorder %s26, 0
      %p131 = por %p129, %p130
      %p132 = scmp.ne.s32.totalorder %s120, %s121
      %p133 = scmp.eq.s32.totalorder %s27, 1
      %p134 = por %p132, %p133
      %p136 = scmp.ne.s32.totalorder %s121, %s135
      %p137 = scmp.eq.s32.totalorder %s27, 0
      %p138 = por %p136, %p137
      %s140 = sadd.s32 %s139, 1
      %p143 = scmp.eq.s32.totalorder %s21, 1
      %p144 = scmp.ne.s32.totalorder %s139, %s141
      %p145 = scmp.eq.s32.totalorder %s21, 0
      %p146 = por %p144, %p145
      %p147 = scmp.ne.s32.totalorder %s139, %s141
      %p148 = scmp.eq.s32.totalorder %s26, 1
      %p149 = por %p147, %p148
      %p150 = scmp.ne.s32.totalorder %s141, %s142
      %p151 = scmp.eq.s32.totalorder %s26, 0
      %p152 = por %p150, %p151
      %p153 = scmp.ne.s32.totalorder %s141, %s142
      %p154 = scmp.eq.s32.totalorder %s27, 1
      %p155 = por %p153, %p154
      %p157 = scmp.ne.s32.totalorder %s142, %s156
      %p158 = scmp.eq.s32.totalorder %s27, 0
      %p159 = por %p157, %p158
      %s161 = sadd.s32 %s160, 1
      %p164 = scmp.eq.s32.totalorder %s21, 1
      %p165 = scmp.ne.s32.totalorder %s160, %s162
      %p166 = scmp.eq.s32.totalorder %s21, 0
      %p167 = por %p165, %p166
      %p168 = scmp.ne.s32.totalorder %s160, %s162
      %p169 = scmp.eq.s32.totalorder %s26, 1
      %p170 = por %p168, %p169
      %p171 = scmp.ne.s32.totalorder %s162, %s163
      %p172 = scmp.eq.s32.totalorder %s26, 0
      %p173 = por %p171, %p172
      %p174 = scmp.ne.s32.totalorder %s162, %s163
      %p175 = scmp.eq.s32.totalorder %s27, 1
      %p176 = por %p174, %p175
      %p178 = scmp.ne.s32.totalorder %s163, %s177
      %p179 = scmp.eq.s32.totalorder %s27, 0
      %p180 = por %p178, %p179
      %s181 = ssub.s32 %s21, %s28
      %p182 = scmp.eq.s32.totalorder %s181, 0
      %s184 = sadd.s32 %s183, 1
      %s185 = scalar_select %p182, %s183, %s184
      %p188 = pneg %p182
      %p189 = scmp.eq.s32.totalorder %s21, 1
      %p190 = por %p188, %p189
      %p191 = scmp.ne.s32.totalorder %s183, %s186
      %p192 = scmp.eq.s32.totalorder %s21, 0
      %p193 = por %p191, %p192
      %p194 = scmp.ne.s32.totalorder %s183, %s186
      %p195 = scmp.eq.s32.totalorder %s26, 1
      %p196 = por %p194, %p195
      %p197 = scmp.ne.s32.totalorder %s186, %s187
      %p198 = scmp.eq.s32.totalorder %s26, 0
      %p199 = por %p197, %p198
      %p200 = scmp.ne.s32.totalorder %s186, %s187
      %p201 = scmp.eq.s32.totalorder %s27, 1
      %p202 = por %p200, %p201
      %p204 = scmp.ne.s32.totalorder %s187, %s203
      %p205 = scmp.eq.s32.totalorder %s27, 0
      %p206 = por %p204, %p205
      %p207 = scmp.le.s32.totalorder 1, %s21
      %p208 = scmp.lt.s32.totalorder %s21, 3
      %p209 = pnand %p207, %p208
      %p210 = pneg %p209
      // Predicated region
      $region9: #{tpu_custom_call.1} parent=5 // pred_check
        _
      $region10: #{tpu_custom_call.1} parent=5 // pred_check_branch
        %212 = sbr.rel (%p209) target = $region12
      $region11: #{tpu_custom_call.1} parent=5 // pred_region
        %s213 = ssub.s32 %s21, 1
        // Predicated region
        $region13: #{tpu_custom_call.1} parent=11 // pred_check
          %p214 = pneg %p68
        $region14: #{tpu_custom_call.1} parent=11 // pred_check_branch
          %216 = sbr.rel (%p214) target = $region16
        $region15: #{tpu_custom_call.1} parent=11 // pred_region
          %218 = vsyncadd [#allocation6], 0
          %s219 = sshll.u32 %s1, 4
          %s220 = int_to_ptr.hbm [resolvable:$true] %s219
          %s221 = sshll.u32 [#allocation5], 4
          %s222 = int_to_ptr.vmem [resolvable:$true] %s221
          %227 = dma.hbm_to_vmem [thread:$0]  %s220, 32, %s222, [#allocation6], 16, 16, 1
        $region16: #{tpu_custom_call.1} parent=11 // pred_fallthru
          _
        // Predicated region
        $region17: #{tpu_custom_call.1} parent=11 // pred_check
          %p228 = pneg %p89
        $region18: #{tpu_custom_call.1} parent=11 // pred_check_branch
          %230 = sbr.rel (%p228) target = $region20
        $region19: #{tpu_custom_call.1} parent=11 // pred_region
          %232 = vsyncadd [#allocation6], 0
          %s233 = sshll.u32 %s2, 4
          %s234 = int_to_ptr.hbm [resolvable:$true] %s233
          %s235 = sshll.u32 [#allocation7], 4
          %s236 = int_to_ptr.vmem [resolvable:$true] %s235
          %241 = dma.hbm_to_vmem [thread:$0]  %s234, 32, %s236, [#allocation6], 16, 16, 1
        $region20: #{tpu_custom_call.1} parent=11 // pred_fallthru
          _
        // Predicated region
        $region21: #{tpu_custom_call.1} parent=11 // pred_check
          %p242 = pneg %p110
        $region22: #{tpu_custom_call.1} parent=11 // pred_check_branch
          %244 = sbr.rel (%p242) target = $region24
        $region23: #{tpu_custom_call.1} parent=11 // pred_region
          %246 = vsyncadd [#allocation9], 0
          %s247 = sshll.u32 %s3, 4
          %s248 = int_to_ptr.hbm [resolvable:$true] %s247
          %s249 = sshll.u32 [#allocation8], 4
          %s250 = int_to_ptr.vmem [resolvable:$true] %s249
          %255 = dma.hbm_to_vmem [thread:$0]  %s248, 2048, %s250, [#allocation9], 64, 64, 4
        $region24: #{tpu_custom_call.1} parent=11 // pred_fallthru
          _
        // Predicated region
        $region25: #{tpu_custom_call.1} parent=11 // pred_check
          %p256 = pneg %p131
        $region26: #{tpu_custom_call.1} parent=11 // pred_check_branch
          %258 = sbr.rel (%p256) target = $region28
        $region27: #{tpu_custom_call.1} parent=11 // pred_region
          _
        $region28: #{tpu_custom_call.1} parent=11 // pred_fallthru
          _
        // Predicated region
        $region29: #{tpu_custom_call.1} parent=11 // pred_check
          %p259 = pneg %p152
        $region30: #{tpu_custom_call.1} parent=11 // pred_check_branch
          %261 = sbr.rel (%p259) target = $region32
        $region31: #{tpu_custom_call.1} parent=11 // pred_region
          _
        $region32: #{tpu_custom_call.1} parent=11 // pred_fallthru
          _
        // Predicated region
        $region33: #{tpu_custom_call.1} parent=11 // pred_check
          %p262 = pneg %p173
        $region34: #{tpu_custom_call.1} parent=11 // pred_check_branch
          %264 = sbr.rel (%p262) target = $region36
        $region35: #{tpu_custom_call.1} parent=11 // pred_region
          _
        $region36: #{tpu_custom_call.1} parent=11 // pred_fallthru
          _
      $region12: #{tpu_custom_call.1} parent=5 // pred_fallthru
        _
      %p265 = scmp.lt.s32.totalorder %s21, 2
      // Predicated region
      $region37: #{tpu_custom_call.1} parent=5 // pred_check
        %p266 = pneg %p265
      $region38: #{tpu_custom_call.1} parent=5 // pred_check_branch
        %268 = sbr.rel (%p266) target = $region40
      $region39: #{tpu_custom_call.1} parent=5 // pred_region
        // Predicated region
        $region41: #{tpu_custom_call.1} parent=39 // pred_check
          %p269 = pneg %p41
        $region42: #{tpu_custom_call.1} parent=39 // pred_check_branch
          %271 = sbr.rel (%p269) target = $region44
        $region43: #{tpu_custom_call.1} parent=39 // pred_region
          %s272 = sand.u32 %s31, 1
          %s273 = scalar_lea.sflag [#allocation3], %s272
          %s274 = sand.u32 %s31, 1
          %s275 = smul.addr %s274, 8
          %s276 = scalar_lea.vmem [#allocation2], %s275
          %278 = vsyncadd %s273, 0
          %s279 = smul.addr %s21, 8
          %s280 = scalar_lea.hbm %s0, %s279
          %s282 = sshll.u32 %s280, 4
          %s283 = int_to_ptr.hbm [resolvable:$true] %s282
          %s284 = sshll.u32 %s276, 4
          %s285 = int_to_ptr.vmem [resolvable:$true] %s284
          %287 = dma.hbm_to_vmem [thread:$0]  %s283, 128, %s285, %s273
        $region44: #{tpu_custom_call.1} parent=39 // pred_fallthru
          _
      $region40: #{tpu_custom_call.1} parent=5 // pred_fallthru
        _
      %p288 = scmp.le.s32.totalorder 1, %s21
      %p289 = scmp.lt.s32.totalorder %s21, 3
      %p290 = pnand %p288, %p289
      %p291 = pneg %p290
      // Predicated region
      $region45: #{tpu_custom_call.1} parent=5 // pred_check
        _
      $region46: #{tpu_custom_call.1} parent=5 // pred_check_branch
        %293 = sbr.rel (%p290) target = $region48
      $region47: #{tpu_custom_call.1} parent=5 // pred_region
        %s294 = ssub.s32 %s21, 1
        %s295 = sand.u32 %s34, 1
        %s296 = scalar_lea.sflag [#allocation3], %s295
        %s297 = sand.u32 %s34, 1
        %s298 = smul.addr %s297, 8
        %s299 = scalar_lea.vmem [#allocation2], %s298
        // Predicated region
        $region49: #{tpu_custom_call.1} parent=47 // pred_check
          %p300 = pneg %p47
        $region50: #{tpu_custom_call.1} parent=47 // pred_check_branch
          %302 = sbr.rel (%p300) target = $region52
        $region51: #{tpu_custom_call.1} parent=47 // pred_region
          %304 = dma.done %s296, 128
        $region52: #{tpu_custom_call.1} parent=47 // pred_fallthru
          _
        // Predicated region
        $region53: #{tpu_custom_call.1} parent=47 // pred_check
          %p305 = pneg %p68
        $region54: #{tpu_custom_call.1} parent=47 // pred_check_branch
          %307 = sbr.rel (%p305) target = $region56
        $region55: #{tpu_custom_call.1} parent=47 // pred_region
          %309 = dma.done [#allocation6], 32
        $region56: #{tpu_custom_call.1} parent=47 // pred_fallthru
          _
        // Predicated region
        $region57: #{tpu_custom_call.1} parent=47 // pred_check
          %p310 = pneg %p89
        $region58: #{tpu_custom_call.1} parent=47 // pred_check_branch
          %312 = sbr.rel (%p310) target = $region60
        $region59: #{tpu_custom_call.1} parent=47 // pred_region
          %314 = dma.done [#allocation6], 32
        $region60: #{tpu_custom_call.1} parent=47 // pred_fallthru
          _
        // Predicated region
        $region61: #{tpu_custom_call.1} parent=47 // pred_check
          %p315 = pneg %p110
        $region62: #{tpu_custom_call.1} parent=47 // pred_check_branch
          %317 = sbr.rel (%p315) target = $region64
        $region63: #{tpu_custom_call.1} parent=47 // pred_region
          %319 = dma.done [#allocation9], 2048
        $region64: #{tpu_custom_call.1} parent=47 // pred_fallthru
          _
        %s320 = sand.u32 %s34, 1
        %s321 = scalar_lea.sflag [#allocation3], %s320
        %s322 = sand.u32 %s34, 1
        %s323 = smul.addr %s322, 8
        %s324 = scalar_lea.vmem [#allocation2], %s323
        %p325 = pneg %p47
        %p326 = pneg %p44
        %p327 = pneg %p68
        %p328 = pneg %p65
        %p329 = pneg %p89
        %p330 = pneg %p86
        %p331 = pneg %p110
        %p332 = pneg %p107
        %p333 = pneg %p131
        %p334 = pneg %p128
        %p335 = pneg %p152
        %p336 = pneg %p149
        %p337 = pneg %p173
        %p338 = pneg %p170
        %p339 = pneg %p199
        %p340 = pneg %p196
        %s341 = sand.u32 %s186, 1
        %s342 = scalar_lea.sflag [#allocation4], %s341
        %s343 = sand.u32 %s186, 1
        %s344 = smul.addr %s343, 8
        %s345 = scalar_lea.vmem [#allocation10], %s344
        %v346 = vld [vmem:[%s299] sm:$0xff]
        %347 = vadd.xlane.f32.xlu0 %v346
        %v348 = vpop.xlane.xlu0 %347
        %v349 = vrcp.pop 128.0
        %v350 = vmul.f32 128.0, %v349
        %v351 = vsub.f32 1.0, %v350
        %v352 = vmul.f32 %v349, %v351
        %v353 = vadd.f32 %v349, %v352
        %vm354 = vweird.f32 %v349
        %v355 = vsel %vm354, %v349, %v353
        %v356 = vmul.f32 %v348, %v355
        %v357 = vsub.f32 %v346, %v356
        %v358 = vmul.f32 %v357, %v357
        %359 = vadd.xlane.f32.xlu0 %v358
        %v360 = vpop.xlane.xlu0 %359
        %v361 = vmul.f32 %v360, 0.007874016
        %v362 = vrsqrt.pop %v361
        %v363 = vmul.f32 %v362, %v361
        %v364 = vmul.f32 %v363, %v362
        %v365 = vmul.f32 0.5, %v364
        %v366 = vsub.f32 1.5, %v365
        %v367 = vmul.f32 %v362, %v366
        %v368 = vmul.f32 %v361, %v367
        %vm369 = vcmp.eq.f32.partialorder %v361, inf
        %v370 = vsel %vm369, %v361, %v368
        %vm371 = vcmp.eq.f32.partialorder %v361, 0.0
        %v372 = vand.u32 %v361, 2147483648
        %v373 = vsel %vm371, %v372, %v370
        %v374 = vadd.f32 %v373, 1e-06
        %v375 = vrcp.pop %v374
        %v376 = vld [vmem:[#allocation5] sm:$0x1]
        %v377 = vmul.f32 %v357, %v375
        %v379 = vperm.slane %v376, 0
        %v381 = vmul.f32 %v379, %v377
        %v382 = vld [vmem:[#allocation7] sm:$0x1]
        %v384 = vperm.slane %v382, 0
        %v386 = vadd.f32 %v381, %v384
        %v387 = vpack.c.bf16 %v386, %v386
        %v388 = vld [vmem:[#allocation8] sm:$0xf]
        %v389 = vld [vmem:[#allocation8 + $0x4] sm:$0xf]
        %v390 = vld [vmem:[#allocation8 + $0x8] sm:$0xf]
        %v391 = vld [vmem:[#allocation8 + $0xc] sm:$0xf]
        %v392 = vld [vmem:[#allocation8 + $0x10] sm:$0xf]
        %v393 = vld [vmem:[#allocation8 + $0x14] sm:$0xf]
        %v394 = vld [vmem:[#allocation8 + $0x18] sm:$0xf]
        %v395 = vld [vmem:[#allocation8 + $0x1c] sm:$0xf]
        %v396 = vld [vmem:[#allocation8 + $0x20] sm:$0xf]
        %v397 = vld [vmem:[#allocation8 + $0x24] sm:$0xf]
        %v398 = vld [vmem:[#allocation8 + $0x28] sm:$0xf]
        %v399 = vld [vmem:[#allocation8 + $0x2c] sm:$0xf]
        %v400 = vld [vmem:[#allocation8 + $0x30] sm:$0xf]
        %v401 = vld [vmem:[#allocation8 + $0x34] sm:$0xf]
        %v402 = vld [vmem:[#allocation8 + $0x38] sm:$0xf]
        %v403 = vld [vmem:[#allocation8 + $0x3c] sm:$0xf]
        %v420 = vunpack.c.l.b16 %v388
        %v421 = vunpack.c.l.b16 %v389
        %v422 = vunpack.c.l.b16 %v390
        %v423 = vunpack.c.l.b16 %v391
        %v424 = vunpack.c.l.b16 %v392
        %v425 = vunpack.c.l.b16 %v393
        %v426 = vunpack.c.l.b16 %v394
        %v427 = vunpack.c.l.b16 %v395
        %v428 = vunpack.c.l.b16 %v396
        %v429 = vunpack.c.l.b16 %v397
        %v430 = vunpack.c.l.b16 %v398
        %v431 = vunpack.c.l.b16 %v399
        %v432 = vunpack.c.l.b16 %v400
        %v433 = vunpack.c.l.b16 %v401
        %v434 = vunpack.c.l.b16 %v402
        %v435 = vunpack.c.l.b16 %v403
        %v436 = vpack.c.b16 %v421, %v420
        %v437 = vpack.c.b16 %v423, %v422
        %v438 = vpack.c.b16 %v425, %v424
        %v439 = vpack.c.b16 %v427, %v426
        %v440 = vpack.c.b16 %v429, %v428
        %v441 = vpack.c.b16 %v431, %v430
        %v442 = vpack.c.b16 %v433, %v432
        %v443 = vpack.c.b16 %v435, %v434
        %452 = vmatpush.bf16.msra.mxu0 %v443
        %453 = vmatpush.bf16.msra.mxu0 %v442
        %454 = vmatpush.bf16.msra.mxu0 %v441
        %455 = vmatpush.bf16.msra.mxu0 %v440
        %456 = vmatpush.bf16.msra.mxu0 %v439
        %457 = vmatpush.bf16.msra.mxu0 %v438
        %458 = vmatpush.bf16.msra.mxu0 %v437
        %459 = vmatpush.bf16.msra.mxu0 %v436
        %460 = vmatmul.bf16.gmra.mxu0 %v387
        %v461 = vpop.f32.mrf.mxu0
        %v462 = vadd.f32 0.0, %v461
        %v463 = vpop.f32.mrf.mxu0
        %464 = vdwg.mxu0
        %v465 = vadd.f32 %v346, %v462
        %v466 = vld [vmem:[%s4] sm:$0x1]
        %v468 = vperm.slane %v466, 0
        %v470 = vadd.f32 %v465, %v468
        %471 = vadd.xlane.f32.xlu0 %v470
        %v472 = vpop.xlane.xlu0 %471
        %v473 = vmul.f32 %v472, %v355
        %v474 = vsub.f32 %v470, %v473
        %v475 = vmul.f32 %v474, %v474
        %476 = vadd.xlane.f32.xlu0 %v475
        %v477 = vpop.xlane.xlu0 %476
        %v478 = vmul.f32 %v477, 0.007874016
        %v479 = vrsqrt.pop %v478
        %v480 = vmul.f32 %v479, %v478
        %v481 = vmul.f32 %v480, %v479
        %v482 = vmul.f32 0.5, %v481
        %v483 = vsub.f32 1.5, %v482
        %v484 = vmul.f32 %v479, %v483
        %v485 = vmul.f32 %v478, %v484
        %vm486 = vcmp.eq.f32.partialorder %v478, inf
        %v487 = vsel %vm486, %v478, %v485
        %vm488 = vcmp.eq.f32.partialorder %v478, 0.0
        %v489 = vand.u32 %v478, 2147483648
        %v490 = vsel %vm488, %v489, %v487
        %v491 = vadd.f32 %v490, 1e-06
        %v492 = vrcp.pop %v491
        %s493 = scalar_lea.vmem [#allocation5], 1
        %v494 = vld [vmem:[%s493] sm:$0x1]
        %v495 = vmul.f32 %v474, %v492
        %v497 = vperm.slane %v494, 0
        %v499 = vmul.f32 %v497, %v495
        %s500 = scalar_lea.vmem [#allocation7], 1
        %v501 = vld [vmem:[%s500] sm:$0x1]
        %v503 = vperm.slane %v501, 0
        %v505 = vadd.f32 %v499, %v503
        %v506 = vpack.c.bf16 %v505, %v505
        %s507 = scalar_lea.vmem [#allocation8], 64
        %v508 = vld [vmem:[%s507] sm:$0xf]
        %v509 = vld [vmem:[%s507 + $0x4] sm:$0xf]
        %v510 = vld [vmem:[%s507 + $0x8] sm:$0xf]
        %v511 = vld [vmem:[%s507 + $0xc] sm:$0xf]
        %v512 = vld [vmem:[%s507 + $0x10] sm:$0xf]
        %v513 = vld [vmem:[%s507 + $0x14] sm:$0xf]
        %v514 = vld [vmem:[%s507 + $0x18] sm:$0xf]
        %v515 = vld [vmem:[%s507 + $0x1c] sm:$0xf]
        %v516 = vld [vmem:[%s507 + $0x20] sm:$0xf]
        %v517 = vld [vmem:[%s507 + $0x24] sm:$0xf]
        %v518 = vld [vmem:[%s507 + $0x28] sm:$0xf]
        %v519 = vld [vmem:[%s507 + $0x2c] sm:$0xf]
        %v520 = vld [vmem:[%s507 + $0x30] sm:$0xf]
        %v521 = vld [vmem:[%s507 + $0x34] sm:$0xf]
        %v522 = vld [vmem:[%s507 + $0x38] sm:$0xf]
        %v523 = vld [vmem:[%s507 + $0x3c] sm:$0xf]
        %v540 = vunpack.c.l.b16 %v508
        %v541 = vunpack.c.l.b16 %v509
        %v542 = vunpack.c.l.b16 %v510
        %v543 = vunpack.c.l.b16 %v511
        %v544 = vunpack.c.l.b16 %v512
        %v545 = vunpack.c.l.b16 %v513
        %v546 = vunpack.c.l.b16 %v514
        %v547 = vunpack.c.l.b16 %v515
        %v548 = vunpack.c.l.b16 %v516
        %v549 = vunpack.c.l.b16 %v517
        %v550 = vunpack.c.l.b16 %v518
        %v551 = vunpack.c.l.b16 %v519
        %v552 = vunpack.c.l.b16 %v520
        %v553 = vunpack.c.l.b16 %v521
        %v554 = vunpack.c.l.b16 %v522
        %v555 = vunpack.c.l.b16 %v523
        %v556 = vpack.c.b16 %v541, %v540
        %v557 = vpack.c.b16 %v543, %v542
        %v558 = vpack.c.b16 %v545, %v544
        %v559 = vpack.c.b16 %v547, %v546
        %v560 = vpack.c.b16 %v549, %v548
        %v561 = vpack.c.b16 %v551, %v550
        %v562 = vpack.c.b16 %v553, %v552
        %v563 = vpack.c.b16 %v555, %v554
        %572 = vmatpush.bf16.msra.mxu0 %v563
        %573 = vmatpush.bf16.msra.mxu0 %v562
        %574 = vmatpush.bf16.msra.mxu0 %v561
        %575 = vmatpush.bf16.msra.mxu0 %v560
        %576 = vmatpush.bf16.msra.mxu0 %v559
        %577 = vmatpush.bf16.msra.mxu0 %v558
        %578 = vmatpush.bf16.msra.mxu0 %v557
        %579 = vmatpush.bf16.msra.mxu0 %v556
        %580 = vmatmul.bf16.gmra.mxu0 %v506
        %v581 = vpop.f32.mrf.mxu0
        %v582 = vadd.f32 0.0, %v581
        %v583 = vpop.f32.mrf.mxu0
        %584 = vdwg.mxu0
        %v585 = vadd.f32 %v470, %v582
        %s586 = scalar_lea.vmem %s4, 1
        %v587 = vld [vmem:[%s586] sm:$0x1]
        %v589 = vperm.slane %v587, 0
        %v591 = vadd.f32 %v585, %v589
        %592 = vadd.xlane.f32.xlu0 %v591
        %v593 = vpop.xlane.xlu0 %592
        %v594 = vmul.f32 %v593, %v355
        %v595 = vsub.f32 %v591, %v594
        %v596 = vmul.f32 %v595, %v595
        %597 = vadd.xlane.f32.xlu0 %v596
        %v598 = vpop.xlane.xlu0 %597
        %v599 = vmul.f32 %v598, 0.007874016
        %v600 = vrsqrt.pop %v599
        %v601 = vmul.f32 %v600, %v599
        %v602 = vmul.f32 %v601, %v600
        %v603 = vmul.f32 0.5, %v602
        %v604 = vsub.f32 1.5, %v603
        %v605 = vmul.f32 %v600, %v604
        %v606 = vmul.f32 %v599, %v605
        %vm607 = vcmp.eq.f32.partialorder %v599, inf
        %v608 = vsel %vm607, %v599, %v606
        %vm609 = vcmp.eq.f32.partialorder %v599, 0.0
        %v610 = vand.u32 %v599, 2147483648
        %v611 = vsel %vm609, %v610, %v608
        %v612 = vadd.f32 %v611, 1e-06
        %v613 = vrcp.pop %v612
        %v614 = vmul.f32 %v612, %v613
        %v615 = vsub.f32 1.0, %v614
        %v616 = vmul.f32 %v613, %v615
        %v617 = vadd.f32 %v613, %v616
        %vm618 = vweird.f32 %v612
        %vm619 = vweird.f32 %v613
        %vm620 = vmor %vm618, %vm619
        %v621 = vsel %vm620, %v613, %v617
        %v622 = vand.u32 2147483647, %v612
        %vm623 = vcmp.eq.f32.partialorder %v622, 8.507059e+37
        %v624 = vand.u32 %v612, 2147483648
        %v625 = vor.u32 1.1754944e-38, %v624
        %v626 = vsel %vm623, %v625, %v621
        %v627 = vmul.f32 1.0, %v626
        %v628 = vld [vmem:[%s5] sm:$0x1]
        %v629 = vmul.f32 %v595, %v627
        %v631 = vperm.slane %v628, 0
        %v633 = vmul.f32 %v631, %v629
        %v634 = vld [vmem:[%s6] sm:$0x1]
        %v636 = vperm.slane %v634, 0
        %v638 = vadd.f32 %v633, %v636
        %639 = vst [vmem:[%s345] sm:$0xff] %v638
        %s640 = sand.u32 %s186, 1
        %s641 = scalar_lea.sflag [#allocation4], %s640
        %s642 = sand.u32 %s186, 1
        %s643 = smul.addr %s642, 8
        %s644 = scalar_lea.vmem [#allocation10], %s643
        // Predicated region
        $region65: #{tpu_custom_call.1} parent=47 // pred_check
          %p645 = pneg %p196
        $region66: #{tpu_custom_call.1} parent=47 // pred_check_branch
          %647 = sbr.rel (%p645) target = $region68
        $region67: #{tpu_custom_call.1} parent=47 // pred_region
          %649 = vsyncadd %s641, 0
          %s650 = smul.addr %s26, 8
          %s651 = scalar_lea.hbm %s7, %s650
          %s653 = sshll.u32 %s644, 4
          %s654 = int_to_ptr.vmem [resolvable:$true] %s653
          %s655 = sshll.u32 %s651, 4
          %s656 = int_to_ptr.hbm [resolvable:$true] %s655
          %658 = dma.vmem_to_hbm [thread:$0]  %s654, 128, %s656, %s641
        $region68: #{tpu_custom_call.1} parent=47 // pred_fallthru
          _
      $region48: #{tpu_custom_call.1} parent=5 // pred_fallthru
        _
      %p659 = scmp.le.s32.totalorder 2, %s21
      // Predicated region
      $region69: #{tpu_custom_call.1} parent=5 // pred_check
        %p660 = pneg %p659
      $region70: #{tpu_custom_call.1} parent=5 // pred_check_branch
        %662 = sbr.rel (%p660) target = $region72
      $region71: #{tpu_custom_call.1} parent=5 // pred_region
        %s663 = ssub.s32 %s21, 2
        // Predicated region
        $region73: #{tpu_custom_call.1} parent=71 // pred_check
          %p664 = pneg %p202
        $region74: #{tpu_custom_call.1} parent=71 // pred_check_branch
          %666 = sbr.rel (%p664) target = $region76
        $region75: #{tpu_custom_call.1} parent=71 // pred_region
          %s667 = sand.u32 %s187, 1
          %s668 = scalar_lea.sflag [#allocation4], %s667
          %s669 = sand.u32 %s187, 1
          %s670 = smul.addr %s669, 8
          %s671 = scalar_lea.vmem [#allocation10], %s670
          %673 = dma.done %s668, 128
        $region76: #{tpu_custom_call.1} parent=71 // pred_fallthru
          _
      $region72: #{tpu_custom_call.1} parent=5 // pred_fallthru
        _
    $region6: #{tpu_custom_call.1} parent=1 // loop_footer
      %s25 = sadd.s32 1, %s21
    $region7: #{tpu_custom_call.1} parent=1 // loop_footer_branch
      %20 = sbr.rel target = $region3
    $region8: #{tpu_custom_call.1} parent=1 // loop_exit
      _
    %674 = vsyncpa [#allocation3], 1
    %s675 = scalar_lea.sflag [#allocation3], 1
    %676 = vsyncpa %s675, 1
    %677 = vsyncpa [#allocation6], 1
    %678 = vsyncpa [#allocation9], 1
    %679 = vsyncpa [#allocation4], 1
    %s680 = scalar_lea.sflag [#allocation4], 1
    %681 = vsyncpa %s680, 1

</llo_original>
